<compile_context>
chip_gen: v7x
topology: tpu7x:2x2x1
jax: 0.10.0
libtpu: 0.0.40
codegen_flags: <defaults>
</compile_context>

<pallas_src>
import functools

import jax
import jax.numpy as jnp
from jax import lax
from jax.experimental import pallas as pl
from jax.experimental.pallas import tpu as pltpu


def _cdiv(a, b):
    return -(-a // b)


# ----------------------------------------------------------------------------
# kernel: one (image, output-row tile, kernel-height tap) grid step
# ----------------------------------------------------------------------------
def _patch_conv_kernel(x_ref, w_ref, b_ref, o_ref, acc_ref):
    # x_ref:   (tile_oh, Wo, p*Cin)   rows of this tap only (tap = grid axis 2)
    # w_ref:   (p, p*Cin, Cout)       whole weight, VMEM resident, single-buffered
    # b_ref:   (1, Cout)              bias (f32)
    # o_ref:   (tile_oh, Wo, Cout) or (tile_oh, Wo*Cout)  lane-dense output block
    # acc_ref: (tile_oh*Wo, Cout) f32 accumulator scratch
    kh = pl.program_id(2)
    toh, wo, kdim = x_ref.shape
    cout = acc_ref.shape[-1]

    @pl.when(kh == 0)
    def _():
        # Initialise with the broadcast bias: fuses the bias add (no extra
        # VPU pass at finalisation).
        acc_ref[...] = jnp.broadcast_to(
            b_ref[...].astype(jnp.float32), (toh * wo, cout))

    # One big MXU matmul per tap: M = tile_oh*Wo, K = p*Cin, N = Cout.
    # Leading-dim collapse is a view when Wo % 8 == 0 (sublane aligned).
    x2d = x_ref[...].reshape(toh * wo, kdim)
    acc_ref[...] += jnp.dot(x2d, w_ref[kh], preferred_element_type=jnp.float32)

    @pl.when(kh == pl.num_programs(2) - 1)
    def _():
        o_ref[...] = acc_ref[...].reshape(o_ref.shape).astype(o_ref.dtype)


# ----------------------------------------------------------------------------
# wrapper
# ----------------------------------------------------------------------------
def _vmem_capacity_bytes():
    try:
        return int(pltpu.get_tpu_info().vmem_capacity_bytes)
    except Exception:
        return 64 * 1024 * 1024  # conservative default (v7x per-TensorCore VMEM)


def downsample2d(x, weight, bias, patch, *, compute_dtype=None, tile_oh=None):
    """Channels-last Downsample2D forward.

    x:      (B, H, W, Cin)
    weight: (Cout, Cin, patch, patch)  (PyTorch Conv2d layout)
    bias:   (Cout,)
    Returns (B, H//patch, W//patch, Cout) in x's original dtype.
    """
    b, h, w, cin = x.shape
    cout = weight.shape[0]
    assert weight.shape == (cout, cin, patch, patch)

    out_dtype = x.dtype
    compute_dtype = jnp.dtype(x.dtype if compute_dtype is None else compute_dtype)

    ho, wo = h // patch, w // patch
    kdim = patch * cin

    # Conv2d with stride == kernel silently drops ragged edge rows/cols.
    x = x[:, : ho * patch, : wo * patch, :]
    # Pure row-major reshape (no data movement): last dim packs (kw, ci).
    x5 = x.reshape(b, ho, patch, wo, kdim).astype(compute_dtype)

    # Weight (Cout, Cin, kh, kw) -> (kh, kw*Cin, Cout); tiny, host-side, once.
    wmat = jnp.transpose(weight, (2, 3, 1, 0)).reshape(patch, kdim, cout)
    wmat = wmat.astype(compute_dtype)
    bvec = bias.astype(jnp.float32).reshape(1, cout)

    # ---- generation-aware VMEM budget & tile selection ----------------------
    vmem_cap = _vmem_capacity_bytes()               # 128 MiB v5e/v6e, 64 MiB v7x
    budget = min(vmem_cap // 2, 64 << 20)           # total pipelined-buffer budget
    in_item = compute_dtype.itemsize
    out_item = jnp.dtype(out_dtype).itemsize
    # Per-output-row bytes: input double-buffer + output double-buffer + f32 acc.
    row_bytes = wo * (2 * kdim * in_item + 2 * cout * out_item + cout * 4)
    # Single-buffered (constant index-map) operands: whole weight + bias.
    static_bytes = patch * kdim * cout * in_item + cout * 4

    if tile_oh is None:
        tile_oh = (budget - static_bytes) // max(row_bytes, 1)
    tile_oh = int(max(1, min(tile_oh, ho)))

    # v7x has two TensorCores: keep >= 2 parallel grid steps when possible.
    if b * _cdiv(ho, tile_oh) < 2 and ho >= 2:
        tile_oh = _cdiv(ho, 2)

    # Lane-dense output protection when Cout is not a multiple of 128: the
    # output is presented flattened as (..., Wo*Cout), so tile_oh becomes the
    # sublane dim of the store and must be a multiple of 8 (or the full dim).
    flatten_out = (cout % 128) != 0
    if flatten_out and tile_oh < ho:
        tile_oh = max(8, (tile_oh // 8) * 8)

    n_tiles = _cdiv(ho, tile_oh)
    ho_pad = n_tiles * tile_oh
    if ho_pad != ho:   # cdiv grid via zero-padded tail tile (sliced off below)
        x5 = jnp.pad(x5, ((0, 0), (0, ho_pad - ho), (0, 0), (0, 0), (0, 0)))

    needed = static_bytes + tile_oh * row_bytes
    vmem_limit = int(min(max(needed + (4 << 20), 32 << 20),
                         max(vmem_cap - (8 << 20), 32 << 20)))

    grid = (b, n_tiles, patch)
    in_specs = [
        pl.BlockSpec((pl.Squeezed(), tile_oh, pl.Squeezed(), wo, kdim),
                     lambda i, j, k: (i, j, k, 0, 0)),
        pl.BlockSpec((patch, kdim, cout), lambda i, j, k: (0, 0, 0),
                     pipeline_mode=pl.Buffered(1)),
        pl.BlockSpec((1, cout), lambda i, j, k: (0, 0),
                     pipeline_mode=pl.Buffered(1)),
    ]
    if flatten_out:
        out_shape = jax.ShapeDtypeStruct((b, ho_pad, wo * cout), out_dtype)
        out_spec = pl.BlockSpec((pl.Squeezed(), tile_oh, wo * cout),
                                lambda i, j, k: (i, j, 0))
    else:
        out_shape = jax.ShapeDtypeStruct((b, ho_pad, wo, cout), out_dtype)
        out_spec = pl.BlockSpec((pl.Squeezed(), tile_oh, wo, cout),
                                lambda i, j, k: (i, j, 0, 0))

    out = pl.pallas_call(
        _patch_conv_kernel,
        out_shape=out_shape,
        grid=grid,
        in_specs=in_specs,
        out_specs=out_spec,
        scratch_shapes=[pltpu.VMEM((tile_oh * wo, cout), jnp.float32)],
        compiler_params=pltpu.CompilerParams(
            dimension_semantics=("parallel", "parallel", "arbitrary"),
            vmem_limit_bytes=vmem_limit),
    )(x5, wmat, bvec)

    if flatten_out:
        out = out.reshape(b, ho_pad, wo, cout)
    return out[:, :ho]


# ----------------------------------------------------------------------------
# example / self-check
# ----------------------------------------------------------------------------
if __name__ == "__main__":
    B, H, W = 2, 32, 32
    C_IN, C_OUT, PATCH = 32, 128, 4   # Cout = 128 keeps the store lane-dense

    key = jax.random.PRNGKey(0)
    kx, kw, kb = jax.random.split(key, 3)
    x = jax.random.normal(kx, (B, H, W, C_IN), dtype=jnp.float32)
    weight = (0.05 * jax.random.normal(kw, (C_OUT, C_IN, PATCH, PATCH))
              ).astype(jnp.float32)
    bias = (0.05 * jax.random.normal(kb, (C_OUT,))).astype(jnp.float32)

    # reference: XLA conv (NHWC x HWIO), stride = kernel = patch
    ref = lax.conv_general_dilated(
        x, jnp.transpose(weight, (2, 3, 1, 0)),
        window_strides=(PATCH, PATCH), padding="VALID",
        dimension_numbers=("NHWC", "HWIO", "NHWC")) + bias

    # f32 path (matches PyTorch module semantics exactly)
    fwd = jax.jit(functools.partial(downsample2d, patch=PATCH))
    out = fwd(x, weight, bias)
    jax.block_until_ready(out)
    assert out.shape == (B, H // PATCH, W // PATCH, C_OUT)
    assert bool(jnp.all(jnp.isfinite(out)))
    assert bool(jnp.allclose(out, ref, atol=1e-4, rtol=1e-4)), \
        float(jnp.max(jnp.abs(out - ref)))

    # bf16 fast path (halves HBM traffic, feeds the bf16 MXU); f32 accumulate.
    fwd_bf16 = jax.jit(functools.partial(downsample2d, patch=PATCH,
                                         compute_dtype=jnp.bfloat16))
    out_bf16 = fwd_bf16(x, weight, bias)
    jax.block_until_ready(out_bf16)
    assert out_bf16.shape == (B, H // PATCH, W // PATCH, C_OUT)
    assert bool(jnp.allclose(out_bf16.astype(jnp.float32), ref,
                             atol=0.15, rtol=0.15))

    print("KERNEL_OK")
</pallas_src>

<mosaic_0001>
module attributes {stable_mosaic.version = 11 : i64} {
  func.func @_patch_conv_kernel(%arg0: i32, %arg1: i32, %arg2: i32, %arg3: memref<1x8x1x8x128xf32, #tpu.memory_space<vmem>>, %arg4: memref<4x128x128xf32, #tpu.memory_space<vmem>>, %arg5: memref<1x128xf32, #tpu.memory_space<vmem>>, %arg6: memref<1x8x8x128xf32, #tpu.memory_space<vmem>>, %arg7: memref<64x128xf32, #tpu.memory_space<vmem>>) attributes {dimension_semantics = [#tpu.dimension_semantics<parallel>, #tpu.dimension_semantics<parallel>, #tpu.dimension_semantics<arbitrary>], iteration_bounds = array<i64: 2, 1, 4>, scalar_prefetch = 0 : i64, scratch_operands = 1 : i64, tpu.core_type = #tpu.core_type<tc>, window_params = [{transform_indices = @transform_0, window_bounds = array<i64: 1, 8, 1, 8, 128>}, {pipeline_mode = #tpu.pipeline_mode<synchronous>, transform_indices = @transform_1, window_bounds = array<i64: 4, 128, 128>}, {pipeline_mode = #tpu.pipeline_mode<synchronous>, transform_indices = @transform_2, window_bounds = array<i64: 1, 128>}, {transform_indices = @transform_3, window_bounds = array<i64: 1, 8, 8, 128>}]} {
    %c0_i32 = arith.constant 0 : i32
    %0 = arith.cmpi eq, %arg2, %c0_i32 : i32
    %1 = arith.extui %0 : i1 to i32
    %c0_i32_0 = arith.constant 0 : i32
    %2 = arith.cmpi ne, %1, %c0_i32_0 : i32
    scf.if %2 {
      %c0_12 = arith.constant 0 : index
      %c0_13 = arith.constant 0 : index
      %16 = vector.load %arg5[%c0_12, %c0_13] : memref<1x128xf32, #tpu.memory_space<vmem>>, vector<1x128xf32>
      %17 = vector.shape_cast %16 : vector<1x128xf32> to vector<1x128xf32>
      %18 = vector.broadcast %17 : vector<1x128xf32> to vector<64x128xf32>
      %c0_14 = arith.constant 0 : index
      %c0_15 = arith.constant 0 : index
      %19 = vector.load %arg7[%c0_14, %c0_15] : memref<64x128xf32, #tpu.memory_space<vmem>>, vector<64x128xf32>
      tpu.vector_store %arg7[%c0_14, %c0_15], %18 {strides = array<i32>} : memref<64x128xf32, #tpu.memory_space<vmem>>, vector<64x128xf32>,
    } else {
    }
    %c0 = arith.constant 0 : index
    %c0_1 = arith.constant 0 : index
    %c0_2 = arith.constant 0 : index
    %c0_3 = arith.constant 0 : index
    %c0_4 = arith.constant 0 : index
    %3 = vector.load %arg3[%c0, %c0_1, %c0_2, %c0_3, %c0_4] : memref<1x8x1x8x128xf32, #tpu.memory_space<vmem>>, vector<1x8x1x8x128xf32>
    %4 = vector.shape_cast %3 : vector<1x8x1x8x128xf32> to vector<8x8x128xf32>
    %5 = vector.shape_cast %4 : vector<8x8x128xf32> to vector<64x128xf32>
    %c0_5 = arith.constant 0 : index
    %c0_6 = arith.constant 0 : index
    %6 = vector.load %arg7[%c0_5, %c0_6] : memref<64x128xf32, #tpu.memory_space<vmem>>, vector<64x128xf32>
    %7 = arith.index_cast %arg2 : i32 to index
    %c0_7 = arith.constant 0 : index
    %c0_8 = arith.constant 0 : index
    %8 = vector.load %arg4[%7, %c0_7, %c0_8] : memref<4x128x128xf32, #tpu.memory_space<vmem>>, vector<1x128x128xf32>
    %9 = vector.shape_cast %8 : vector<1x128x128xf32> to vector<128x128xf32>
    %cst = arith.constant dense<0.000000e+00> : vector<64x128xf32>
    %10 = tpu.matmul %5, %9, %cst {dimension_numbers = #tpu.dot_dimension_numbers<[1], [0], [0], [1], [0, 0, 1, 1], [], []>} : vector<64x128xf32>, vector<128x128xf32>, vector<64x128xf32> -> vector<64x128xf32>
    %11 = arith.addf %6, %10 : vector<64x128xf32>
    %c0_9 = arith.constant 0 : index
    %c0_10 = arith.constant 0 : index
    %12 = vector.load %arg7[%c0_9, %c0_10] : memref<64x128xf32, #tpu.memory_space<vmem>>, vector<64x128xf32>
    tpu.vector_store %arg7[%c0_9, %c0_10], %11 {strides = array<i32>} : memref<64x128xf32, #tpu.memory_space<vmem>>, vector<64x128xf32>,
    %c3_i32 = arith.constant 3 : i32
    %13 = arith.cmpi eq, %arg2, %c3_i32 : i32
    %14 = arith.extui %13 : i1 to i32
    %c0_i32_11 = arith.constant 0 : i32
    %15 = arith.cmpi ne, %14, %c0_i32_11 : i32
    scf.if %15 {
      %c0_12 = arith.constant 0 : index
      %c0_13 = arith.constant 0 : index
      %16 = vector.load %arg7[%c0_12, %c0_13] : memref<64x128xf32, #tpu.memory_space<vmem>>, vector<64x128xf32>
      %17 = vector.shape_cast %16 : vector<64x128xf32> to vector<8x8x128xf32>
      %c0_14 = arith.constant 0 : index
      %c0_15 = arith.constant 0 : index
      %c0_16 = arith.constant 0 : index
      %c0_17 = arith.constant 0 : index
      %18 = vector.load %arg6[%c0_14, %c0_15, %c0_16, %c0_17] : memref<1x8x8x128xf32, #tpu.memory_space<vmem>>, vector<1x8x8x128xf32>
      %19 = vector.shape_cast %18 : vector<1x8x8x128xf32> to vector<8x8x128xf32>
      %20 = vector.shape_cast %17 : vector<8x8x128xf32> to vector<1x8x8x128xf32>
      tpu.vector_store %arg6[%c0_14, %c0_15, %c0_16, %c0_17], %20 {strides = array<i32>} : memref<1x8x8x128xf32, #tpu.memory_space<vmem>>, vector<1x8x8x128xf32>,
    } else {
    }
    return
  }
  func.func @transform_0(%arg0: i32, %arg1: i32, %arg2: i32) -> (i32, i32, i32, i32, i32) {
    %c0_i32 = arith.constant 0 : i32
    %c0_i32_0 = arith.constant 0 : i32
    %c0_i32_1 = arith.constant 0 : i32
    return %arg0, %arg1, %arg2, %c0_i32, %c0_i32_0 : i32, i32, i32, i32, i32
  }
  func.func @transform_1(%arg0: i32, %arg1: i32, %arg2: i32) -> (i32, i32, i32) {
    %c0_i32 = arith.constant 0 : i32
    %c0_i32_0 = arith.constant 0 : i32
    %c0_i32_1 = arith.constant 0 : i32
    %c0_i32_2 = arith.constant 0 : i32
    return %c0_i32, %c0_i32_0, %c0_i32_1 : i32, i32, i32
  }
  func.func @transform_2(%arg0: i32, %arg1: i32, %arg2: i32) -> (i32, i32) {
    %c0_i32 = arith.constant 0 : i32
    %c0_i32_0 = arith.constant 0 : i32
    %c0_i32_1 = arith.constant 0 : i32
    return %c0_i32, %c0_i32_0 : i32, i32
  }
  func.func @transform_3(%arg0: i32, %arg1: i32, %arg2: i32) -> (i32, i32, i32, i32) {
    %c0_i32 = arith.constant 0 : i32
    %c0_i32_0 = arith.constant 0 : i32
    %c0_i32_1 = arith.constant 0 : i32
    return %arg0, %arg1, %c0_i32, %c0_i32_0 : i32, i32, i32, i32
  }
}

</mosaic_0001>

<llo_original>
// kernel: downsample2d.1
$region0: #{downsample2d.1}
  #allocation0 [shape = 'u32[]', space=smem, size = 0x4, offset = 0x4, fixed_abs, tag = 'smem constant byte address 0x4 - core index']
  #allocation1 [shape = 'u32[144,128]{1,0:T(1,128)}', space=vmem, size = 0x12000, scoped, tag = 'internal scratch']
  #allocation2 [shape = 'f32[64,128]{1,0:T(8,128)}', space=vmem, size = 0x8000, scoped, tag = 'scratch operand']
  %s0 = inlined_call_operand.vmem [shape: f32[2,8,4,8,128], index: 0, kind: input, shape index: {}]
  %s1 = inlined_call_operand.vmem [shape: f32[4,128,128], index: 1, kind: input, shape index: {}]
  %s2 = inlined_call_operand.vmem [shape: f32[1,128], index: 2, kind: input, shape index: {}]
  %s3 = inlined_call_operand.hbm [shape: f32[2,8,8,128], index: 3, kind: output, shape index: {}]
  %s4 = sld [smem:[#allocation0]]
  $region91: #{downsample2d.1} parent=0
    _
  %s6 = ssub.s32 1, %s4
  %s7 = scalar_select 0, %s6, %s4
  $region1: #{downsample2d.1} parent=0
    #allocation3 [shape = 'u8[65536]{0}', space=vmem, size = 0x10000, scoped, tag = 'input window, operand 0']
    #allocation4 [shape = 'u8[65536]{0}', space=vmem, size = 0x10000, scoped, tag = 'output window, operand 0']
    #allocation5 [shape = 's32[2]{0}', space=sflag, size = 0x8, scoped, tag = 'scoped memory for downsample2d.1']
    %8 = vsyncpa [#allocation5], 0
    %s9 = scalar_lea.sflag [#allocation5], 1
    %10 = vsyncpa %s9, 0
    loop: start=0, step=1, limit=10
    $region2: #{downsample2d.1} parent=1 // loop_pre_header
      _
    $region3: #{downsample2d.1} parent=1 // loop_header
      %s12 = sphi 0, %s16
      %p13 = scmp.ge.s32.totalorder %s12, 10
      %s19 = sphi 0, %s38
      %s20 = sphi 0, %s34
      %s21 = sphi 0, %s30
      %s22 = sphi 0, %s19
      %s23 = sphi 0, %s20
      %s24 = sphi 0, %s21
      %s25 = sphi 0, %s22
      %s26 = sphi 0, %s23
      %s27 = sphi 0, %s24
      %s45 = sphi 0, %s47
      %s48 = sphi 0, %s45
      %s49 = sphi 0, %s48
      %s65 = sphi 0, %s49
      %s69 = sphi 0, %s69
      %s71 = sphi 0, %s69
      %s72 = sphi 0, %s71
      %s86 = sphi 0, %s72
      %s90 = sphi 0, %s90
      %s92 = sphi 0, %s90
      %s93 = sphi 0, %s92
      %s107 = sphi 0, %s93
      %s115 = sphi 0, %s117
      %s118 = sphi 0, %s115
      %s119 = sphi 0, %s118
      %s135 = sphi 0, %s119
    $region4: #{downsample2d.1} parent=1 // loop_header_branch
      %15 = sbr.rel (%p13) target = $region8
    $region5: #{downsample2d.1} parent=1 // loop_body
      %s17 = ssub.s32 %s12, 1
      %s18 = ssub.s32 %s12, 2
      %s28 = sadd.s32 1, %s21
      %p29 = scmp.ge.s32.totalorder %s28, 4
      %s30 = scalar_select %p29, 0, %s28
      %s31 = sadd.s32 1, %s20
      %s32 = scalar_select %p29, %s31, %s20
      %p33 = scmp.ge.s32.totalorder %s32, 1
      %s34 = scalar_select %p33, 0, %s32
      %s35 = sadd.s32 1, %s19
      %s36 = scalar_select %p33, %s35, %s19
      %p37 = scmp.ge.s32.totalorder %s36, 2
      %s38 = scalar_select %p37, 0, %s36
      %s39 = ssub.s32 %s19, %s38
      %s40 = ssub.s32 %s20, %s34
      %s41 = sor.u32 %s39, %s40
      %s42 = ssub.s32 %s21, %s30
      %s43 = sor.u32 %s41, %s42
      %p44 = scmp.eq.s32.totalorder %s43, 0
      %s46 = sadd.s32 %s45, 1
      %s47 = scalar_select %p44, %s45, %s46
      %p50 = pneg %p44
      %p51 = scmp.eq.s32.totalorder %s12, 7
      %p52 = por %p50, %p51
      %p53 = scmp.ne.s32.totalorder %s45, %s48
      %p54 = scmp.eq.s32.totalorder %s12, 0
      %p55 = por %p53, %p54
      %p56 = scmp.ne.s32.totalorder %s45, %s48
      %p57 = scmp.eq.s32.totalorder %s17, 7
      %p58 = por %p56, %p57
      %p59 = scmp.ne.s32.totalorder %s48, %s49
      %p60 = scmp.eq.s32.totalorder %s17, 0
      %p61 = por %p59, %p60
      %p62 = scmp.ne.s32.totalorder %s48, %s49
      %p63 = scmp.eq.s32.totalorder %s18, 7
      %p64 = por %p62, %p63
      %p66 = scmp.ne.s32.totalorder %s49, %s65
      %p67 = scmp.eq.s32.totalorder %s18, 0
      %p68 = por %p66, %p67
      %s70 = sadd.s32 %s69, 1
      %p73 = scmp.eq.s32.totalorder %s12, 7
      %p74 = scmp.ne.s32.totalorder %s69, %s71
      %p75 = scmp.eq.s32.totalorder %s12, 0
      %p76 = por %p74, %p75
      %p77 = scmp.ne.s32.totalorder %s69, %s71
      %p78 = scmp.eq.s32.totalorder %s17, 7
      %p79 = por %p77, %p78
      %p80 = scmp.ne.s32.totalorder %s71, %s72
      %p81 = scmp.eq.s32.totalorder %s17, 0
      %p82 = por %p80, %p81
      %p83 = scmp.ne.s32.totalorder %s71, %s72
      %p84 = scmp.eq.s32.totalorder %s18, 7
      %p85 = por %p83, %p84
      %p87 = scmp.ne.s32.totalorder %s72, %s86
      %p88 = scmp.eq.s32.totalorder %s18, 0
      %p89 = por %p87, %p88
      %s91 = sadd.s32 %s90, 1
      %p94 = scmp.eq.s32.totalorder %s12, 7
      %p95 = scmp.ne.s32.totalorder %s90, %s92
      %p96 = scmp.eq.s32.totalorder %s12, 0
      %p97 = por %p95, %p96
      %p98 = scmp.ne.s32.totalorder %s90, %s92
      %p99 = scmp.eq.s32.totalorder %s17, 7
      %p100 = por %p98, %p99
      %p101 = scmp.ne.s32.totalorder %s92, %s93
      %p102 = scmp.eq.s32.totalorder %s17, 0
      %p103 = por %p101, %p102
      %p104 = scmp.ne.s32.totalorder %s92, %s93
      %p105 = scmp.eq.s32.totalorder %s18, 7
      %p106 = por %p104, %p105
      %p108 = scmp.ne.s32.totalorder %s93, %s107
      %p109 = scmp.eq.s32.totalorder %s18, 0
      %p110 = por %p108, %p109
      %s111 = ssub.s32 %s19, %s38
      %s112 = ssub.s32 %s20, %s34
      %s113 = sor.u32 %s111, %s112
      %p114 = scmp.eq.s32.totalorder %s113, 0
      %s116 = sadd.s32 %s115, 1
      %s117 = scalar_select %p114, %s115, %s116
      %p120 = pneg %p114
      %p121 = scmp.eq.s32.totalorder %s12, 7
      %p122 = por %p120, %p121
      %p123 = scmp.ne.s32.totalorder %s115, %s118
      %p124 = scmp.eq.s32.totalorder %s12, 0
      %p125 = por %p123, %p124
      %p126 = scmp.ne.s32.totalorder %s115, %s118
      %p127 = scmp.eq.s32.totalorder %s17, 7
      %p128 = por %p126, %p127
      %p129 = scmp.ne.s32.totalorder %s118, %s119
      %p130 = scmp.eq.s32.totalorder %s17, 0
      %p131 = por %p129, %p130
      %p132 = scmp.ne.s32.totalorder %s118, %s119
      %p133 = scmp.eq.s32.totalorder %s18, 7
      %p134 = por %p132, %p133
      %p136 = scmp.ne.s32.totalorder %s119, %s135
      %p137 = scmp.eq.s32.totalorder %s18, 0
      %p138 = por %p136, %p137
      %p139 = scmp.le.s32.totalorder 1, %s12
      %p140 = scmp.lt.s32.totalorder %s12, 9
      %p141 = pnand %p139, %p140
      %p142 = pneg %p141
      // Predicated region
      $region9: #{downsample2d.1} parent=5 // pred_check
        _
      $region10: #{downsample2d.1} parent=5 // pred_check_branch
        %144 = sbr.rel (%p141) target = $region12
      $region11: #{downsample2d.1} parent=5 // pred_region
        %s145 = ssub.s32 %s12, 1
        // Predicated region
        $region13: #{downsample2d.1} parent=11 // pred_check
          %p146 = pneg %p82
        $region14: #{downsample2d.1} parent=11 // pred_check_branch
          %148 = sbr.rel (%p146) target = $region16
        $region15: #{downsample2d.1} parent=11 // pred_region
          _
        $region16: #{downsample2d.1} parent=11 // pred_fallthru
          _
        // Predicated region
        $region17: #{downsample2d.1} parent=11 // pred_check
          %p149 = pneg %p103
        $region18: #{downsample2d.1} parent=11 // pred_check_branch
          %151 = sbr.rel (%p149) target = $region20
        $region19: #{downsample2d.1} parent=11 // pred_region
          _
        $region20: #{downsample2d.1} parent=11 // pred_fallthru
          _
      $region12: #{downsample2d.1} parent=5 // pred_fallthru
        _
      %p152 = scmp.lt.s32.totalorder %s12, 8
      // Predicated region
      $region21: #{downsample2d.1} parent=5 // pred_check
        %p153 = pneg %p152
      $region22: #{downsample2d.1} parent=5 // pred_check_branch
        %155 = sbr.rel (%p153) target = $region24
      $region23: #{downsample2d.1} parent=5 // pred_region
        // Predicated region
        $region25: #{downsample2d.1} parent=23 // pred_check
          %p156 = pneg %p55
        $region26: #{downsample2d.1} parent=23 // pred_check_branch
          %158 = sbr.rel (%p156) target = $region28
        $region27: #{downsample2d.1} parent=23 // pred_region
          %s159 = sand.u32 %s45, 1
          %s160 = sand.u32 %s45, 1
          %s161 = smul.addr %s160, 64
          %s162 = scalar_lea.vmem [#allocation3], %s161
          %s163 = smul.u32 8, %s20
          %s164 = smul.addr %s163, 4
          %s165 = sadd.s32 %s21, %s164
          %s166 = smul.addr %s19, 32
          %s167 = sadd.s32 %s165, %s166
          %s168 = smul.addr %s167, 8
          %s169 = scalar_lea.vmem %s0, %s168
          // Predicated region
          $region29: #{downsample2d.1} parent=27 // pred_check
            _
          $region30: #{downsample2d.1} parent=27 // pred_check_branch
            %171 = sbr.rel (0) target = $region32
          $region31: #{downsample2d.1} parent=27 // pred_region
            // Predicated region
            $region33: #{downsample2d.1} parent=31 // pred_check
              _
            $region34: #{downsample2d.1} parent=31 // pred_check_branch
              %173 = sbr.rel (0) target = $region36
            $region35: #{downsample2d.1} parent=31 // pred_region
              // Predicated region
              $region48: #{downsample2d.1} parent=35 // pred_check
                _
              $region49: #{downsample2d.1} parent=35 // pred_check_branch
                %202 = sbr.rel (0) target = $region51
              $region50: #{downsample2d.1} parent=35 // pred_region
                loop: start=0, step=1, limit=1
                $region52: #{downsample2d.1} parent=50 // loop_pre_header
                  _
                $region53: #{downsample2d.1} parent=50 // loop_header
                  %s204 = sphi 0, %s208
                  %p205 = scmp.ge.s32.totalorder %s204, 1
                  %s209 = sphi %s169, %s169
                  %s210 = sphi %s162, %s162
                $region54: #{downsample2d.1} parent=50 // loop_header_branch
                  %207 = sbr.rel (%p205) target = $region58
                $region55: #{downsample2d.1} parent=50 // loop_body
                  %v211 = vld [vmem:[%s209] sm:$0xff]
                  %212 = vst [vmem:[%s210] sm:$0xff] %v211
                  %v213 = vld [vmem:[%s209 + $0x20] sm:$0xff]
                  %214 = vst [vmem:[%s210 + $0x8] sm:$0xff] %v213
                  %v215 = vld [vmem:[%s209 + $0x40] sm:$0xff]
                  %216 = vst [vmem:[%s210 + $0x10] sm:$0xff] %v215
                  %v217 = vld [vmem:[%s209 + $0x60] sm:$0xff]
                  %218 = vst [vmem:[%s210 + $0x18] sm:$0xff] %v217
                  %v219 = vld [vmem:[%s209 + $0x80] sm:$0xff]
                  %220 = vst [vmem:[%s210 + $0x20] sm:$0xff] %v219
                  %v221 = vld [vmem:[%s209 + $0xa0] sm:$0xff]
                  %222 = vst [vmem:[%s210 + $0x28] sm:$0xff] %v221
                  %v223 = vld [vmem:[%s209 + $0xc0] sm:$0xff]
                  %224 = vst [vmem:[%s210 + $0x30] sm:$0xff] %v223
                  %v225 = vld [vmem:[%s209 + $0xe0] sm:$0xff]
                  %226 = vst [vmem:[%s210 + $0x38] sm:$0xff] %v225
                $region56: #{downsample2d.1} parent=50 // loop_footer
                  %s208 = sadd.s32 1, %s204
                $region57: #{downsample2d.1} parent=50 // loop_footer_branch
                  %203 = sbr.rel target = $region53
                $region58: #{downsample2d.1} parent=50 // loop_exit
                  _
              $region51: #{downsample2d.1} parent=35 // pred_fallthru
                _
              // Predicated region
              $region59: #{downsample2d.1} parent=35 // pred_check
                _
              $region60: #{downsample2d.1} parent=35 // pred_check_branch
                %228 = sbr.rel target = $region62
              $region61: #{downsample2d.1} parent=35 // pred_region
                _
              $region62: #{downsample2d.1} parent=35 // pred_fallthru
                _
            $region36: #{downsample2d.1} parent=31 // pred_fallthru
              _
            // Predicated region
            $region37: #{downsample2d.1} parent=31 // pred_check
              _
            $region38: #{downsample2d.1} parent=31 // pred_check_branch
              %175 = sbr.rel target = $region40
            $region39: #{downsample2d.1} parent=31 // pred_region
              loop: start=0, step=1, limit=1
              $region41: #{downsample2d.1} parent=39 // loop_pre_header
                _
              $region42: #{downsample2d.1} parent=39 // loop_header
                %s178 = sphi 0, %s182
                %p179 = scmp.ge.s32.totalorder %s178, 1
                %s183 = sphi %s169, %s169
                %s184 = sphi %s162, %s162
              $region43: #{downsample2d.1} parent=39 // loop_header_branch
                %181 = sbr.rel (%p179) target = $region47
              $region44: #{downsample2d.1} parent=39 // loop_body
                %v185 = vld [vmem:[%s183] sm:$0xff]
                %186 = vst [vmem:[%s184] sm:$0xff] %v185
                %v187 = vld [vmem:[%s183 + $0x20] sm:$0xff]
                %188 = vst [vmem:[%s184 + $0x8] sm:$0xff] %v187
                %v189 = vld [vmem:[%s183 + $0x40] sm:$0xff]
                %190 = vst [vmem:[%s184 + $0x10] sm:$0xff] %v189
                %v191 = vld [vmem:[%s183 + $0x60] sm:$0xff]
                %192 = vst [vmem:[%s184 + $0x18] sm:$0xff] %v191
                %v193 = vld [vmem:[%s183 + $0x80] sm:$0xff]
                %194 = vst [vmem:[%s184 + $0x20] sm:$0xff] %v193
                %v195 = vld [vmem:[%s183 + $0xa0] sm:$0xff]
                %196 = vst [vmem:[%s184 + $0x28] sm:$0xff] %v195
                %v197 = vld [vmem:[%s183 + $0xc0] sm:$0xff]
                %198 = vst [vmem:[%s184 + $0x30] sm:$0xff] %v197
                %v199 = vld [vmem:[%s183 + $0xe0] sm:$0xff]
                %200 = vst [vmem:[%s184 + $0x38] sm:$0xff] %v199
              $region45: #{downsample2d.1} parent=39 // loop_footer
                %s182 = sadd.s32 1, %s178
              $region46: #{downsample2d.1} parent=39 // loop_footer_branch
                %177 = sbr.rel target = $region42
              $region47: #{downsample2d.1} parent=39 // loop_exit
                _
            $region40: #{downsample2d.1} parent=31 // pred_fallthru
              _
          $region32: #{downsample2d.1} parent=27 // pred_fallthru
            _
          %229 = vnop
        $region28: #{downsample2d.1} parent=23 // pred_fallthru
          _
      $region24: #{downsample2d.1} parent=5 // pred_fallthru
        _
      %p230 = scmp.le.s32.totalorder 1, %s12
      %p231 = scmp.lt.s32.totalorder %s12, 9
      %p232 = pnand %p230, %p231
      %p233 = pneg %p232
      // Predicated region
      $region63: #{downsample2d.1} parent=5 // pred_check
        _
      $region64: #{downsample2d.1} parent=5 // pred_check_branch
        %235 = sbr.rel (%p232) target = $region66
      $region65: #{downsample2d.1} parent=5 // pred_region
        %s236 = ssub.s32 %s12, 1
        %s237 = sand.u32 %s48, 1
        %s238 = sand.u32 %s48, 1
        %s239 = smul.addr %s238, 64
        %s240 = scalar_lea.vmem [#allocation3], %s239
        // Predicated region
        $region67: #{downsample2d.1} parent=65 // pred_check
          %p241 = pneg %p61
        $region68: #{downsample2d.1} parent=65 // pred_check_branch
          %243 = sbr.rel (%p241) target = $region70
        $region69: #{downsample2d.1} parent=65 // pred_region
          _
        $region70: #{downsample2d.1} parent=65 // pred_fallthru
          _
        %s244 = sand.u32 %s48, 1
        %s245 = sand.u32 %s48, 1
        %s246 = smul.addr %s245, 64
        %s247 = scalar_lea.vmem [#allocation3], %s246
        %p248 = pneg %p61
        %p249 = pneg %p58
        %p250 = pneg %p82
        %p251 = pneg %p79
        %p252 = pneg %p103
        %p253 = pneg %p100
        %p254 = pneg %p131
        %p255 = pneg %p128
        %s256 = sand.u32 %s118, 1
        %s257 = scalar_lea.sflag [#allocation5], %s256
        %s258 = sand.u32 %s118, 1
        %s259 = smul.addr %s258, 64
        %s260 = scalar_lea.vmem [#allocation4], %s259
        %s261 = smul.u32 8, %s23
        %s262 = smul.u32 8, %s23
        %p263 = scmp.eq.s32.totalorder %s24, 0
        // Predicated region
        $region71: #{downsample2d.1} parent=65 // pred_check
          %p264 = pneg %p263
        $region72: #{downsample2d.1} parent=65 // pred_check_branch
          %266 = sbr.rel (%p264) target = $region74
        $region73: #{downsample2d.1} parent=65 // pred_region
          %v267 = vld [vmem:[%s2] sm:$0x1]
          %v269 = vlaneseq
          %v270 = vshrl.u32 %v269, 7
          %v271 = vsub.s32 0, %v270
          %v272 = vrot.slane %v267, %v271
          %274 = vst [vmem:[#allocation2] sm:$0xff] %v272
          %275 = vst [vmem:[#allocation2 + $0x8] sm:$0xff] %v272
          %276 = vst [vmem:[#allocation2 + $0x10] sm:$0xff] %v272
          %277 = vst [vmem:[#allocation2 + $0x18] sm:$0xff] %v272
          %278 = vst [vmem:[#allocation2 + $0x20] sm:$0xff] %v272
          %279 = vst [vmem:[#allocation2 + $0x28] sm:$0xff] %v272
          %280 = vst [vmem:[#allocation2 + $0x30] sm:$0xff] %v272
          %281 = vst [vmem:[#allocation2 + $0x38] sm:$0xff] %v272
        $region74: #{downsample2d.1} parent=65 // pred_fallthru
          _
        %v282 = vld [vmem:[%s240] sm:$0xff]
        %v283 = vld [vmem:[%s240 + $0x8] sm:$0xff]
        %v284 = vld [vmem:[%s240 + $0x10] sm:$0xff]
        %v285 = vld [vmem:[%s240 + $0x18] sm:$0xff]
        %v286 = vld [vmem:[%s240 + $0x20] sm:$0xff]
        %v287 = vld [vmem:[%s240 + $0x28] sm:$0xff]
        %v288 = vld [vmem:[%s240 + $0x30] sm:$0xff]
        %v289 = vld [vmem:[%s240 + $0x38] sm:$0xff]
        %v290 = vld [vmem:[#allocation2] sm:$0xff]
        %v291 = vld [vmem:[#allocation2 + $0x8] sm:$0xff]
        %v292 = vld [vmem:[#allocation2 + $0x10] sm:$0xff]
        %v293 = vld [vmem:[#allocation2 + $0x18] sm:$0xff]
        %v294 = vld [vmem:[#allocation2 + $0x20] sm:$0xff]
        %v295 = vld [vmem:[#allocation2 + $0x28] sm:$0xff]
        %v296 = vld [vmem:[#allocation2 + $0x30] sm:$0xff]
        %v297 = vld [vmem:[#allocation2 + $0x38] sm:$0xff]
        %s298 = smul.u32 %s24, 128
        %s299 = scalar_lea.vmem %s1, %s298
        %v300 = vld [vmem:[%s299] sm:$0xff]
        %v301 = vld [vmem:[%s299 + $0x8] sm:$0xff]
        %v302 = vld [vmem:[%s299 + $0x10] sm:$0xff]
        %v303 = vld [vmem:[%s299 + $0x18] sm:$0xff]
        %v304 = vld [vmem:[%s299 + $0x20] sm:$0xff]
        %v305 = vld [vmem:[%s299 + $0x28] sm:$0xff]
        %v306 = vld [vmem:[%s299 + $0x30] sm:$0xff]
        %v307 = vld [vmem:[%s299 + $0x38] sm:$0xff]
        %v308 = vld [vmem:[%s299 + $0x40] sm:$0xff]
        %v309 = vld [vmem:[%s299 + $0x48] sm:$0xff]
        %v310 = vld [vmem:[%s299 + $0x50] sm:$0xff]
        %v311 = vld [vmem:[%s299 + $0x58] sm:$0xff]
        %v312 = vld [vmem:[%s299 + $0x60] sm:$0xff]
        %v313 = vld [vmem:[%s299 + $0x68] sm:$0xff]
        %v314 = vld [vmem:[%s299 + $0x70] sm:$0xff]
        %v315 = vld [vmem:[%s299 + $0x78] sm:$0xff]
        %316 = vmatprep.subr.mxu0 0.0
        %317 = vmatpush1.msra.mxu0 %v300
        %318 = vmatprep.subr.mxu0 0.0
        %319 = vmatpush1.msra.mxu0 %v301
        %320 = vmatprep.subr.mxu0 0.0
        %321 = vmatpush1.msra.mxu0 %v302
        %322 = vmatprep.subr.mxu0 0.0
        %323 = vmatpush1.msra.mxu0 %v303
        %324 = vmatprep.subr.mxu0 0.0
        %325 = vmatpush1.msra.mxu0 %v304
        %326 = vmatprep.subr.mxu0 0.0
        %327 = vmatpush1.msra.mxu0 %v305
        %328 = vmatprep.subr.mxu0 0.0
        %329 = vmatpush1.msra.mxu0 %v306
        %330 = vmatprep.subr.mxu0 0.0
        %331 = vmatpush1.msra.mxu0 %v307
        %332 = vmatprep.subr.mxu0 0.0
        %333 = vmatpush1.msra.mxu0 %v308
        %334 = vmatprep.subr.mxu0 0.0
        %335 = vmatpush1.msra.mxu0 %v309
        %336 = vmatprep.subr.mxu0 0.0
        %337 = vmatpush1.msra.mxu0 %v310
        %338 = vmatprep.subr.mxu0 0.0
        %339 = vmatpush1.msra.mxu0 %v311
        %340 = vmatprep.subr.mxu0 0.0
        %341 = vmatpush1.msra.mxu0 %v312
        %342 = vmatprep.subr.mxu0 0.0
        %343 = vmatpush1.msra.mxu0 %v313
        %344 = vmatprep.subr.mxu0 0.0
        %345 = vmatpush1.msra.mxu0 %v314
        %346 = vmatprep.subr.mxu0 0.0
        %347 = vmatpush1.msra.mxu0 %v315
        %348 = vmatprep.subr.mxu0 0.0
        %349 = vmatpush1.msra.mxu0 0.0
        %350 = vmatprep.subr.mxu0 0.0
        %351 = vmatpush1.msra.mxu0 0.0
        %352 = vmatprep.subr.mxu0 0.0
        %353 = vmatpush1.msra.mxu0 0.0
        %354 = vmatprep.subr.mxu0 0.0
        %355 = vmatpush1.msra.mxu0 0.0
        %356 = vmatprep.subr.mxu0 0.0
        %357 = vmatpush1.msra.mxu0 0.0
        %358 = vmatprep.subr.mxu0 0.0
        %359 = vmatpush1.msra.mxu0 0.0
        %360 = vmatprep.subr.mxu0 0.0
        %361 = vmatpush1.msra.mxu0 0.0
        %362 = vmatprep.subr.mxu0 0.0
        %363 = vmatpush1.msra.mxu0 0.0
        %364 = vmatprep.subr.mxu0 0.0
        %365 = vmatpush1.msra.mxu0 0.0
        %366 = vmatprep.subr.mxu0 0.0
        %367 = vmatpush1.msra.mxu0 0.0
        %368 = vmatprep.subr.mxu0 0.0
        %369 = vmatpush1.msra.mxu0 0.0
        %370 = vmatprep.subr.mxu0 0.0
        %371 = vmatpush1.msra.mxu0 0.0
        %372 = vmatprep.subr.mxu0 0.0
        %373 = vmatpush1.msra.mxu0 0.0
        %374 = vmatprep.subr.mxu0 0.0
        %375 = vmatpush1.msra.mxu0 0.0
        %376 = vmatprep.subr.mxu0 0.0
        %377 = vmatpush1.msra.mxu0 0.0
        %378 = vmatprep.subr.mxu0 0.0
        %379 = vmatpush1.msra.mxu0 0.0
        %380 = vmatprep.mubr.f32.mxu0 0.0
        %381 = vmatmul.mubr.f32.gmra.mrb[0].mxu0 %v282
        %v382 = vpop.f32.mrb[0].mxu0
        %v383 = vadd.f32 0.0, %v382
        %v384 = vpop.f32.mrb[0].mxu0
        %385 = vmatprep.mubr.f32.mxu0 0.0
        %386 = vmatmul.mubr.f32.gmra.mrb[0].mxu0 %v283
        %v387 = vpop.f32.mrb[0].mxu0
        %v388 = vadd.f32 0.0, %v387
        %v389 = vpop.f32.mrb[0].mxu0
        %390 = vmatprep.mubr.f32.mxu0 0.0
        %391 = vmatmul.mubr.f32.gmra.mrb[0].mxu0 %v284
        %v392 = vpop.f32.mrb[0].mxu0
        %v393 = vadd.f32 0.0, %v392
        %v394 = vpop.f32.mrb[0].mxu0
        %395 = vmatprep.mubr.f32.mxu0 0.0
        %396 = vmatmul.mubr.f32.gmra.mrb[0].mxu0 %v285
        %v397 = vpop.f32.mrb[0].mxu0
        %v398 = vadd.f32 0.0, %v397
        %v399 = vpop.f32.mrb[0].mxu0
        %400 = vmatprep.mubr.f32.mxu0 0.0
        %401 = vmatmul.mubr.f32.gmra.mrb[0].mxu0 %v286
        %v402 = vpop.f32.mrb[0].mxu0
        %v403 = vadd.f32 0.0, %v402
        %v404 = vpop.f32.mrb[0].mxu0
        %405 = vmatprep.mubr.f32.mxu0 0.0
        %406 = vmatmul.mubr.f32.gmra.mrb[0].mxu0 %v287
        %v407 = vpop.f32.mrb[0].mxu0
        %v408 = vadd.f32 0.0, %v407
        %v409 = vpop.f32.mrb[0].mxu0
        %410 = vmatprep.mubr.f32.mxu0 0.0
        %411 = vmatmul.mubr.f32.gmra.mrb[0].mxu0 %v288
        %v412 = vpop.f32.mrb[0].mxu0
        %v413 = vadd.f32 0.0, %v412
        %v414 = vpop.f32.mrb[0].mxu0
        %415 = vmatprep.mubr.f32.mxu0 0.0
        %416 = vmatmul.mubr.f32.gmra.mrb[0].mxu0 %v289
        %v417 = vpop.f32.mrb[0].mxu0
        %v418 = vadd.f32 0.0, %v417
        %v419 = vpop.f32.mrb[0].mxu0
        %420 = vdwg.mxu0
        %v421 = vadd.f32 %v290, %v383
        %v422 = vadd.f32 %v291, %v388
        %v423 = vadd.f32 %v292, %v393
        %v424 = vadd.f32 %v293, %v398
        %v425 = vadd.f32 %v294, %v403
        %v426 = vadd.f32 %v295, %v408
        %v427 = vadd.f32 %v296, %v413
        %v428 = vadd.f32 %v297, %v418
        %429 = vst [vmem:[#allocation2] sm:$0xff] %v421
        %430 = vst [vmem:[#allocation2 + $0x8] sm:$0xff] %v422
        %431 = vst [vmem:[#allocation2 + $0x10] sm:$0xff] %v423
        %432 = vst [vmem:[#allocation2 + $0x18] sm:$0xff] %v424
        %433 = vst [vmem:[#allocation2 + $0x20] sm:$0xff] %v425
        %434 = vst [vmem:[#allocation2 + $0x28] sm:$0xff] %v426
        %435 = vst [vmem:[#allocation2 + $0x30] sm:$0xff] %v427
        %436 = vst [vmem:[#allocation2 + $0x38] sm:$0xff] %v428
        %p437 = scmp.eq.s32.totalorder %s24, 3
        // Predicated region
        $region75: #{downsample2d.1} parent=65 // pred_check
          %p438 = pneg %p437
        $region76: #{downsample2d.1} parent=65 // pred_check_branch
          %440 = sbr.rel (%p438) target = $region78
        $region77: #{downsample2d.1} parent=65 // pred_region
          %v441 = vld [vmem:[#allocation2] sm:$0xff]
          %v442 = vld [vmem:[#allocation2 + $0x8] sm:$0xff]
          %v443 = vld [vmem:[#allocation2 + $0x10] sm:$0xff]
          %v444 = vld [vmem:[#allocation2 + $0x18] sm:$0xff]
          %v445 = vld [vmem:[#allocation2 + $0x20] sm:$0xff]
          %v446 = vld [vmem:[#allocation2 + $0x28] sm:$0xff]
          %v447 = vld [vmem:[#allocation2 + $0x30] sm:$0xff]
          %v448 = vld [vmem:[#allocation2 + $0x38] sm:$0xff]
          %449 = vst [vmem:[%s260] sm:$0xff] %v441
          %450 = vst [vmem:[%s260 + $0x8] sm:$0xff] %v442
          %451 = vst [vmem:[%s260 + $0x10] sm:$0xff] %v443
          %452 = vst [vmem:[%s260 + $0x18] sm:$0xff] %v444
          %453 = vst [vmem:[%s260 + $0x20] sm:$0xff] %v445
          %454 = vst [vmem:[%s260 + $0x28] sm:$0xff] %v446
          %455 = vst [vmem:[%s260 + $0x30] sm:$0xff] %v447
          %456 = vst [vmem:[%s260 + $0x38] sm:$0xff] %v448
        $region78: #{downsample2d.1} parent=65 // pred_fallthru
          _
        %s457 = sand.u32 %s118, 1
        %s458 = scalar_lea.sflag [#allocation5], %s457
        %s459 = sand.u32 %s118, 1
        %s460 = smul.addr %s459, 64
        %s461 = scalar_lea.vmem [#allocation4], %s460
        // Predicated region
        $region79: #{downsample2d.1} parent=65 // pred_check
          %p462 = pneg %p128
        $region80: #{downsample2d.1} parent=65 // pred_check_branch
          %464 = sbr.rel (%p462) target = $region82
        $region81: #{downsample2d.1} parent=65 // pred_region
          %s465 = smul.u32 8, %s23
          %s467 = ssub.s32 1024, 1024
          %468 = vsyncadd %s458, %s467
          %s469 = smul.addr %s22, 8
          %s470 = sadd.s32 %s465, %s469
          %s471 = smul.addr %s470, 128
          %s472 = scalar_lea.hbm %s3, %s471
          %s473 = sshll.u32 %s461, 4
          %s474 = int_to_ptr.vmem [resolvable:$true] %s473
          %479 = dma.vmem_to_hbm [thread:$0]  %s474, 1024, %s472, %s458, 128, 128, 8
        $region82: #{downsample2d.1} parent=65 // pred_fallthru
          _
      $region66: #{downsample2d.1} parent=5 // pred_fallthru
        _
      %p480 = scmp.le.s32.totalorder 2, %s12
      // Predicated region
      $region83: #{downsample2d.1} parent=5 // pred_check
        %p481 = pneg %p480
      $region84: #{downsample2d.1} parent=5 // pred_check_branch
        %483 = sbr.rel (%p481) target = $region86
      $region85: #{downsample2d.1} parent=5 // pred_region
        %s484 = ssub.s32 %s12, 2
        // Predicated region
        $region87: #{downsample2d.1} parent=85 // pred_check
          %p485 = pneg %p134
        $region88: #{downsample2d.1} parent=85 // pred_check_branch
          %487 = sbr.rel (%p485) target = $region90
        $region89: #{downsample2d.1} parent=85 // pred_region
          %s488 = sand.u32 %s119, 1
          %s489 = scalar_lea.sflag [#allocation5], %s488
          %s490 = sand.u32 %s119, 1
          %s491 = smul.addr %s490, 64
          %s492 = scalar_lea.vmem [#allocation4], %s491
          %493 = dma.done %s489, 1024
        $region90: #{downsample2d.1} parent=85 // pred_fallthru
          _
      $region86: #{downsample2d.1} parent=5 // pred_fallthru
        _
    $region6: #{downsample2d.1} parent=1 // loop_footer
      %s16 = sadd.s32 1, %s12
    $region7: #{downsample2d.1} parent=1 // loop_footer_branch
      %11 = sbr.rel target = $region3
    $region8: #{downsample2d.1} parent=1 // loop_exit
      _
    %494 = vsyncpa [#allocation5], 1
    %s495 = scalar_lea.sflag [#allocation5], 1
    %496 = vsyncpa %s495, 1

</llo_original>
